<compile_context>
chip_gen: v5e
topology: v5e:2x2
jax: 0.10.0
libtpu: 0.0.40
codegen_flags: <defaults>
</compile_context>

<pallas_src>
import jax
import jax.numpy as jnp
from jax.experimental import pallas as pl
from jax.experimental.pallas import tpu as pltpu


def _round_up(x, m):
    return (x + m - 1) // m * m


def _linear_kernel(x_ref, w_ref, b_ref, o_ref, acc_ref):
    # x_ref: (tm, tk) input tile
    # w_ref: (tn, tk) weight tile in native (out, in) layout (no transpose)
    # b_ref: (1, tn)  f32 bias tile
    # o_ref: (tm, tn) output tile
    # acc_ref: (tm, tn) f32 VMEM accumulator scratch
    k = pl.program_id(2)

    @pl.when(k == 0)
    def _():
        acc_ref[...] = jnp.zeros_like(acc_ref)

    # y[m, n] = sum_k x[m, k] * W[n, k]  ==  x @ W.T, without materializing W.T.
    acc_ref[...] += jax.lax.dot_general(
        x_ref[...], w_ref[...],
        dimension_numbers=(((1,), (1,)), ((), ())),
        preferred_element_type=jnp.float32)

    @pl.when(k == pl.num_programs(2) - 1)
    def _():
        # Bias add / epilogue stays in f32 (VPU-safe on v5e), cast on store.
        o_ref[...] = (acc_ref[...] + b_ref[...]).astype(o_ref.dtype)


def linear_forward(x, W, b=None, *, tm=128, tn=256, tk=512):
    """Forward pass of Linear: x.reshape(B, -1) @ W.T + b (tiled Pallas kernel)."""
    M = x.shape[0]
    x2d = x.reshape(M, -1)                 # (M, K) — keep caller's dtype (bf16 OK)
    K = x2d.shape[1]
    N, Kw = W.shape
    assert Kw == K, f"in_features mismatch: W has {Kw}, input has {K}"

    out_dtype = jnp.result_type(x2d.dtype, W.dtype)

    # Tile sizes: M tiles sublane-aligned (>=8), N/K tiles lane-aligned (x128).
    tm = min(tm, _round_up(M, 8))
    tn = min(tn, _round_up(N, 128))
    tk = min(tk, _round_up(K, 128))

    Mp, Np, Kp = _round_up(M, tm), _round_up(N, tn), _round_up(K, tk)

    # Zero-pad to tile multiples (zero K-padding is exact; extra M rows and
    # N columns are sliced off after the kernel).
    xp = jnp.pad(x2d, ((0, Mp - M), (0, Kp - K))) if (Mp != M or Kp != K) else x2d
    Wp = jnp.pad(W, ((0, Np - N), (0, Kp - K))) if (Np != N or Kp != K) else W
    if b is None:
        bp = jnp.zeros((1, Np), jnp.float32)
    else:
        bp = jnp.pad(b.astype(jnp.float32), (0, Np - N)).reshape(1, Np)

    grid = (Mp // tm, Np // tn, Kp // tk)

    flops = 2 * Mp * Np * Kp
    bytes_accessed = (Mp * Kp * xp.dtype.itemsize
                      + Np * Kp * Wp.dtype.itemsize
                      + Np * 4
                      + Mp * Np * jnp.dtype(out_dtype).itemsize)

    out = pl.pallas_call(
        _linear_kernel,
        out_shape=jax.ShapeDtypeStruct((Mp, Np), out_dtype),
        grid_spec=pltpu.PrefetchScalarGridSpec(
            num_scalar_prefetch=0,
            grid=grid,
            in_specs=[
                pl.BlockSpec((tm, tk), lambda i, j, k: (i, k),
                             memory_space=pltpu.MemorySpace.VMEM),   # x tile
                pl.BlockSpec((tn, tk), lambda i, j, k: (j, k),
                             memory_space=pltpu.MemorySpace.VMEM),   # W tile (native layout)
                pl.BlockSpec((1, tn), lambda i, j, k: (0, j),
                             memory_space=pltpu.MemorySpace.VMEM),   # bias tile
            ],
            out_specs=pl.BlockSpec((tm, tn), lambda i, j, k: (i, j),
                                   memory_space=pltpu.MemorySpace.VMEM),
            scratch_shapes=[pltpu.VMEM((tm, tn), jnp.float32)],
        ),
        compiler_params=pltpu.CompilerParams(
            dimension_semantics=("parallel", "parallel", "arbitrary"),
            vmem_limit_bytes=32 * 1024 * 1024,
        ),
        cost_estimate=pl.CostEstimate(
            flops=flops, bytes_accessed=bytes_accessed, transcendentals=0),
    )(xp, Wp, bp)

    return out[:M, :N]


if __name__ == "__main__":
    # Deterministic parameter init mimicking the module's __init__:
    #   W ~ U(-sqrt(1/in_features), sqrt(1/in_features)), shape (out, in)
    #   b ~ U(-sqrt(1/in_features), sqrt(1/in_features)), shape (out,)
    key = jax.random.PRNGKey(0)
    kx, kw, kb = jax.random.split(key, 3)

    # Input: NCHW, small shape. in_features = 4*16*16 = 1024, out_features = 32.
    B, C, H, W_sp = 2, 4, 16, 16
    in_features = C * H * W_sp
    out_features = 32

    x = jax.random.normal(kx, (B, C, H, W_sp), dtype=jnp.float32)
    k = 1.0 / in_features
    bound = jnp.sqrt(k)
    W = jax.random.uniform(kw, (out_features, in_features),
                           minval=-bound, maxval=bound, dtype=jnp.float32)
    b = jax.random.uniform(kb, (out_features,),
                           minval=-bound, maxval=bound, dtype=jnp.float32)

    # f32 path (matches the numpy reference module exactly).
    out = jax.block_until_ready(linear_forward(x, W, b))
    ref = x.reshape(B, -1) @ W.T + b
    assert out.shape == (B, out_features)
    assert jnp.allclose(out, ref, atol=1e-4, rtol=1e-5)

    # bf16 path (halves HBM traffic; MXU accumulates in f32) — loose tolerance.
    out_bf16 = jax.block_until_ready(
        linear_forward(x.astype(jnp.bfloat16), W.astype(jnp.bfloat16), b))
    assert out_bf16.shape == (B, out_features)
    assert jnp.allclose(out_bf16.astype(jnp.float32), ref, atol=2e-2, rtol=2e-2)

    print("KERNEL_OK")
</pallas_src>

<mosaic_0001>
module attributes {stable_mosaic.version = 11 : i64} {
  func.func @_linear_kernel(%arg0: i32, %arg1: i32, %arg2: i32, %arg3: memref<8x512xf32, #tpu.memory_space<vmem>>, %arg4: memref<128x512xf32, #tpu.memory_space<vmem>>, %arg5: memref<1x128xf32, #tpu.memory_space<vmem>>, %arg6: memref<8x128xf32, #tpu.memory_space<vmem>>, %arg7: memref<8x128xf32, #tpu.memory_space<vmem>>) attributes {dimension_semantics = [#tpu.dimension_semantics<parallel>, #tpu.dimension_semantics<parallel>, #tpu.dimension_semantics<arbitrary>], iteration_bounds = array<i64: 1, 1, 2>, scalar_prefetch = 0 : i64, scratch_operands = 1 : i64, tpu.core_type = #tpu.core_type<tc>, window_params = [{transform_indices = @transform_0, window_bounds = array<i64: 8, 512>}, {transform_indices = @transform_1, window_bounds = array<i64: 128, 512>}, {transform_indices = @transform_2, window_bounds = array<i64: 1, 128>}, {transform_indices = @transform_3, window_bounds = array<i64: 8, 128>}]} {
    %c0_i32 = arith.constant 0 : i32
    %0 = arith.cmpi eq, %arg2, %c0_i32 : i32
    %1 = arith.extui %0 : i1 to i32
    %c0_i32_0 = arith.constant 0 : i32
    %2 = arith.cmpi ne, %1, %c0_i32_0 : i32
    scf.if %2 {
      %cst_9 = arith.constant 0.000000e+00 : f32
      %12 = vector.broadcast %cst_9 : f32 to vector<8x128xf32>
      %c0_10 = arith.constant 0 : index
      %c0_11 = arith.constant 0 : index
      %13 = vector.load %arg7[%c0_10, %c0_11] : memref<8x128xf32, #tpu.memory_space<vmem>>, vector<8x128xf32>
      tpu.vector_store %arg7[%c0_10, %c0_11], %12 {strides = array<i32>} : memref<8x128xf32, #tpu.memory_space<vmem>>, vector<8x128xf32>,
    } else {
    }
    %c0 = arith.constant 0 : index
    %c0_1 = arith.constant 0 : index
    %3 = vector.load %arg7[%c0, %c0_1] : memref<8x128xf32, #tpu.memory_space<vmem>>, vector<8x128xf32>
    %c0_2 = arith.constant 0 : index
    %c0_3 = arith.constant 0 : index
    %4 = vector.load %arg3[%c0_2, %c0_3] : memref<8x512xf32, #tpu.memory_space<vmem>>, vector<8x512xf32>
    %c0_4 = arith.constant 0 : index
    %c0_5 = arith.constant 0 : index
    %5 = vector.load %arg4[%c0_4, %c0_5] : memref<128x512xf32, #tpu.memory_space<vmem>>, vector<128x512xf32>
    %cst = arith.constant dense<0.000000e+00> : vector<8x128xf32>
    %6 = tpu.matmul %4, %5, %cst {dimension_numbers = #tpu.dot_dimension_numbers<[1], [1], [0], [0], [0, 0, 1, 0], [], []>} : vector<8x512xf32>, vector<128x512xf32>, vector<8x128xf32> -> vector<8x128xf32>
    %7 = arith.addf %3, %6 : vector<8x128xf32>
    %c0_6 = arith.constant 0 : index
    %c0_7 = arith.constant 0 : index
    %8 = vector.load %arg7[%c0_6, %c0_7] : memref<8x128xf32, #tpu.memory_space<vmem>>, vector<8x128xf32>
    tpu.vector_store %arg7[%c0_6, %c0_7], %7 {strides = array<i32>} : memref<8x128xf32, #tpu.memory_space<vmem>>, vector<8x128xf32>,
    %c1_i32 = arith.constant 1 : i32
    %9 = arith.cmpi eq, %arg2, %c1_i32 : i32
    %10 = arith.extui %9 : i1 to i32
    %c0_i32_8 = arith.constant 0 : i32
    %11 = arith.cmpi ne, %10, %c0_i32_8 : i32
    scf.if %11 {
      %c0_9 = arith.constant 0 : index
      %c0_10 = arith.constant 0 : index
      %12 = vector.load %arg7[%c0_9, %c0_10] : memref<8x128xf32, #tpu.memory_space<vmem>>, vector<8x128xf32>
      %c0_11 = arith.constant 0 : index
      %c0_12 = arith.constant 0 : index
      %13 = vector.load %arg5[%c0_11, %c0_12] : memref<1x128xf32, #tpu.memory_space<vmem>>, vector<1x128xf32>
      %14 = vector.broadcast %13 : vector<1x128xf32> to vector<8x128xf32>
      %15 = arith.addf %12, %14 : vector<8x128xf32>
      %c0_13 = arith.constant 0 : index
      %c0_14 = arith.constant 0 : index
      %16 = vector.load %arg6[%c0_13, %c0_14] : memref<8x128xf32, #tpu.memory_space<vmem>>, vector<8x128xf32>
      tpu.vector_store %arg6[%c0_13, %c0_14], %15 {strides = array<i32>} : memref<8x128xf32, #tpu.memory_space<vmem>>, vector<8x128xf32>,
    } else {
    }
    return
  }
  func.func @transform_0(%arg0: i32, %arg1: i32, %arg2: i32) -> (i32, i32) {
    %c0_i32 = arith.constant 0 : i32
    return %arg0, %arg2 : i32, i32
  }
  func.func @transform_1(%arg0: i32, %arg1: i32, %arg2: i32) -> (i32, i32) {
    %c0_i32 = arith.constant 0 : i32
    return %arg1, %arg2 : i32, i32
  }
  func.func @transform_2(%arg0: i32, %arg1: i32, %arg2: i32) -> (i32, i32) {
    %c0_i32 = arith.constant 0 : i32
    %c0_i32_0 = arith.constant 0 : i32
    return %c0_i32, %arg1 : i32, i32
  }
  func.func @transform_3(%arg0: i32, %arg1: i32, %arg2: i32) -> (i32, i32) {
    %c0_i32 = arith.constant 0 : i32
    return %arg0, %arg1 : i32, i32
  }
}

</mosaic_0001>

<llo_original>
// kernel: tpu_custom_call.1
$region0: #{tpu_custom_call.1}
  #allocation0 [shape = 'u32[]', space=smem, size = 0x4, offset = 0x4, fixed_abs, tag = 'smem constant byte address 0x4 - core index']
  #allocation1 [shape = 'u32[72,128]{1,0:T(1,128)}', space=vmem, size = 0x9000, scoped, tag = 'internal scratch']
  #allocation2 [shape = 'f32[8,128]{1,0:T(8,128)}', space=vmem, size = 0x1000, scoped, tag = 'scratch operand']
  %s0 = inlined_call_operand.hbm [shape: f32[8,1024], index: 0, kind: input, shape index: {}]
  %s1 = inlined_call_operand.hbm [shape: f32[128,1024], index: 1, kind: input, shape index: {}]
  %s2 = inlined_call_operand.vmem [shape: f32[1,128], index: 2, kind: input, shape index: {}]
  %s3 = inlined_call_operand.hbm [shape: f32[8,128], index: 3, kind: output, shape index: {}]
  %s4 = sld [smem:[#allocation0]]
  $region61: #{tpu_custom_call.1} parent=0
    _
  %s6 = ssub.s32 1, %s4
  %s7 = scalar_select 0, %s6, %s4
  $region1: #{tpu_custom_call.1} parent=0
    #allocation3 [shape = 'u8[32768]{0}', space=vmem, size = 0x8000, scoped, tag = 'input window, operand 0']
    #allocation4 [shape = 's32[2]{0}', space=sflag, size = 0x8, scoped, tag = 'scoped memory for tpu_custom_call.1']
    #allocation5 [shape = 's32[2]{0}', space=sflag, size = 0x8, scoped, tag = 'scoped memory for tpu_custom_call.1']
    #allocation6 [shape = 'u8[524288]{0}', space=vmem, size = 0x80000, scoped, tag = 'input window, operand 1']
    #allocation7 [shape = 's32[2]{0}', space=sflag, size = 0x8, scoped, tag = 'scoped memory for tpu_custom_call.1']
    #allocation8 [shape = 'u8[4096]{0}', space=vmem, size = 0x1000, scoped, tag = 'output window, operand 0, single buffered']
    %8 = vsyncpa [#allocation4], 0
    %s9 = scalar_lea.sflag [#allocation4], 1
    %10 = vsyncpa %s9, 0
    %11 = vsyncpa [#allocation7], 0
    %s12 = scalar_lea.sflag [#allocation7], 1
    %13 = vsyncpa %s12, 0
    %14 = vsyncpa [#allocation5], 0
    loop: start=0, step=1, limit=4
    $region2: #{tpu_custom_call.1} parent=1 // loop_pre_header
      _
    $region3: #{tpu_custom_call.1} parent=1 // loop_header
      %s16 = sphi 0, %s20
      %p17 = scmp.ge.s32.totalorder %s16, 4
      %s23 = sphi 0, %s42
      %s24 = sphi 0, %s38
      %s25 = sphi 0, %s34
      %s26 = sphi 0, %s23
      %s27 = sphi 0, %s24
      %s28 = sphi 0, %s25
      %s29 = sphi 0, %s26
      %s30 = sphi 0, %s27
      %s31 = sphi 0, %s28
      %s47 = sphi 0, %s49
      %s50 = sphi 0, %s47
      %s51 = sphi 0, %s50
      %s67 = sphi 0, %s51
      %s75 = sphi 0, %s77
      %s78 = sphi 0, %s75
      %s79 = sphi 0, %s78
      %s95 = sphi 0, %s79
      %s101 = sphi 0, %s103
      %s104 = sphi 0, %s101
      %s105 = sphi 0, %s104
      %s121 = sphi 0, %s105
      %s129 = sphi 0, %s131
      %s132 = sphi 0, %s129
      %s133 = sphi 0, %s132
      %s149 = sphi 0, %s133
    $region4: #{tpu_custom_call.1} parent=1 // loop_header_branch
      %19 = sbr.rel (%p17) target = $region8
    $region5: #{tpu_custom_call.1} parent=1 // loop_body
      %s21 = ssub.s32 %s16, 1
      %s22 = ssub.s32 %s16, 2
      %s32 = sadd.s32 1, %s25
      %p33 = scmp.ge.s32.totalorder %s32, 2
      %s34 = scalar_select %p33, 0, %s32
      %s35 = sadd.s32 1, %s24
      %s36 = scalar_select %p33, %s35, %s24
      %p37 = scmp.ge.s32.totalorder %s36, 1
      %s38 = scalar_select %p37, 0, %s36
      %s39 = sadd.s32 1, %s23
      %s40 = scalar_select %p37, %s39, %s23
      %p41 = scmp.ge.s32.totalorder %s40, 1
      %s42 = scalar_select %p41, 0, %s40
      %s43 = ssub.s32 %s23, %s42
      %s44 = ssub.s32 %s25, %s34
      %s45 = sor.u32 %s43, %s44
      %p46 = scmp.eq.s32.totalorder %s45, 0
      %s48 = sadd.s32 %s47, 1
      %s49 = scalar_select %p46, %s47, %s48
      %p52 = pneg %p46
      %p53 = scmp.eq.s32.totalorder %s16, 1
      %p54 = por %p52, %p53
      %p55 = scmp.ne.s32.totalorder %s47, %s50
      %p56 = scmp.eq.s32.totalorder %s16, 0
      %p57 = por %p55, %p56
      %p58 = scmp.ne.s32.totalorder %s47, %s50
      %p59 = scmp.eq.s32.totalorder %s21, 1
      %p60 = por %p58, %p59
      %p61 = scmp.ne.s32.totalorder %s50, %s51
      %p62 = scmp.eq.s32.totalorder %s21, 0
      %p63 = por %p61, %p62
      %p64 = scmp.ne.s32.totalorder %s50, %s51
      %p65 = scmp.eq.s32.totalorder %s22, 1
      %p66 = por %p64, %p65
      %p68 = scmp.ne.s32.totalorder %s51, %s67
      %p69 = scmp.eq.s32.totalorder %s22, 0
      %p70 = por %p68, %p69
      %s71 = ssub.s32 %s24, %s38
      %s72 = ssub.s32 %s25, %s34
      %s73 = sor.u32 %s71, %s72
      %p74 = scmp.eq.s32.totalorder %s73, 0
      %s76 = sadd.s32 %s75, 1
      %s77 = scalar_select %p74, %s75, %s76
      %p80 = pneg %p74
      %p81 = scmp.eq.s32.totalorder %s16, 1
      %p82 = por %p80, %p81
      %p83 = scmp.ne.s32.totalorder %s75, %s78
      %p84 = scmp.eq.s32.totalorder %s16, 0
      %p85 = por %p83, %p84
      %p86 = scmp.ne.s32.totalorder %s75, %s78
      %p87 = scmp.eq.s32.totalorder %s21, 1
      %p88 = por %p86, %p87
      %p89 = scmp.ne.s32.totalorder %s78, %s79
      %p90 = scmp.eq.s32.totalorder %s21, 0
      %p91 = por %p89, %p90
      %p92 = scmp.ne.s32.totalorder %s78, %s79
      %p93 = scmp.eq.s32.totalorder %s22, 1
      %p94 = por %p92, %p93
      %p96 = scmp.ne.s32.totalorder %s79, %s95
      %p97 = scmp.eq.s32.totalorder %s22, 0
      %p98 = por %p96, %p97
      %s99 = ssub.s32 %s24, %s38
      %p100 = scmp.eq.s32.totalorder %s99, 0
      %s102 = sadd.s32 %s101, 1
      %s103 = scalar_select %p100, %s101, %s102
      %p106 = pneg %p100
      %p107 = scmp.eq.s32.totalorder %s16, 1
      %p108 = por %p106, %p107
      %p109 = scmp.ne.s32.totalorder %s101, %s104
      %p110 = scmp.eq.s32.totalorder %s16, 0
      %p111 = por %p109, %p110
      %p112 = scmp.ne.s32.totalorder %s101, %s104
      %p113 = scmp.eq.s32.totalorder %s21, 1
      %p114 = por %p112, %p113
      %p115 = scmp.ne.s32.totalorder %s104, %s105
      %p116 = scmp.eq.s32.totalorder %s21, 0
      %p117 = por %p115, %p116
      %p118 = scmp.ne.s32.totalorder %s104, %s105
      %p119 = scmp.eq.s32.totalorder %s22, 1
      %p120 = por %p118, %p119
      %p122 = scmp.ne.s32.totalorder %s105, %s121
      %p123 = scmp.eq.s32.totalorder %s22, 0
      %p124 = por %p122, %p123
      %s125 = ssub.s32 %s23, %s42
      %s126 = ssub.s32 %s24, %s38
      %s127 = sor.u32 %s125, %s126
      %p128 = scmp.eq.s32.totalorder %s127, 0
      %s130 = sadd.s32 %s129, 1
      %s131 = scalar_select %p128, %s129, %s130
      %p134 = pneg %p128
      %p135 = scmp.eq.s32.totalorder %s16, 1
      %p136 = por %p134, %p135
      %p137 = scmp.ne.s32.totalorder %s129, %s132
      %p138 = scmp.eq.s32.totalorder %s16, 0
      %p139 = por %p137, %p138
      %p140 = scmp.ne.s32.totalorder %s129, %s132
      %p141 = scmp.eq.s32.totalorder %s21, 1
      %p142 = por %p140, %p141
      %p143 = scmp.ne.s32.totalorder %s132, %s133
      %p144 = scmp.eq.s32.totalorder %s21, 0
      %p145 = por %p143, %p144
      %p146 = scmp.ne.s32.totalorder %s132, %s133
      %p147 = scmp.eq.s32.totalorder %s22, 1
      %p148 = por %p146, %p147
      %p150 = scmp.ne.s32.totalorder %s133, %s149
      %p151 = scmp.eq.s32.totalorder %s22, 0
      %p152 = por %p150, %p151
      %p153 = scmp.le.s32.totalorder 1, %s16
      %p154 = scmp.lt.s32.totalorder %s16, 3
      %p155 = pnand %p153, %p154
      %p156 = pneg %p155
      // Predicated region
      $region9: #{tpu_custom_call.1} parent=5 // pred_check
        _
      $region10: #{tpu_custom_call.1} parent=5 // pred_check_branch
        %158 = sbr.rel (%p155) target = $region12
      $region11: #{tpu_custom_call.1} parent=5 // pred_region
        %s159 = ssub.s32 %s16, 1
        // Predicated region
        $region13: #{tpu_custom_call.1} parent=11 // pred_check
          %p160 = pneg %p117
        $region14: #{tpu_custom_call.1} parent=11 // pred_check_branch
          %162 = sbr.rel (%p160) target = $region16
        $region15: #{tpu_custom_call.1} parent=11 // pred_region
          %p163 = scmp.lt.s32.totalorder %s27, 0
          %s164 = scalar_select %p163, %s27, 0
          %s165 = scalar_lea.vmem %s2, %s164
        $region16: #{tpu_custom_call.1} parent=11 // pred_fallthru
          _
      $region12: #{tpu_custom_call.1} parent=5 // pred_fallthru
        _
      %p166 = scmp.lt.s32.totalorder %s16, 2
      // Predicated region
      $region17: #{tpu_custom_call.1} parent=5 // pred_check
        %p167 = pneg %p166
      $region18: #{tpu_custom_call.1} parent=5 // pred_check_branch
        %169 = sbr.rel (%p167) target = $region20
      $region19: #{tpu_custom_call.1} parent=5 // pred_region
        // Predicated region
        $region21: #{tpu_custom_call.1} parent=19 // pred_check
          %p170 = pneg %p57
        $region22: #{tpu_custom_call.1} parent=19 // pred_check_branch
          %172 = sbr.rel (%p170) target = $region24
        $region23: #{tpu_custom_call.1} parent=19 // pred_region
          %s173 = sand.u32 %s47, 1
          %s174 = scalar_lea.sflag [#allocation4], %s173
          %s175 = sand.u32 %s47, 1
          %s176 = smul.addr %s175, 32
          %s177 = scalar_lea.vmem [#allocation3], %s176
          %s178 = smul.u32 4, %s25
          %180 = vsyncadd %s174, 0
          %s181 = smul.addr %s23, 8
          %s182 = sadd.s32 %s178, %s181
          %s183 = smul.addr %s182, 8
          %s184 = scalar_lea.hbm %s0, %s183
          %s186 = sshll.u32 %s184, 4
          %s187 = int_to_ptr.hbm [resolvable:$true] %s186
          %s188 = sshll.u32 %s177, 4
          %s189 = int_to_ptr.vmem [resolvable:$true] %s188
          %191 = dma.hbm_to_vmem [thread:$0]  %s187, 512, %s189, %s174
        $region24: #{tpu_custom_call.1} parent=19 // pred_fallthru
          _
        // Predicated region
        $region25: #{tpu_custom_call.1} parent=19 // pred_check
          %p192 = pneg %p85
        $region26: #{tpu_custom_call.1} parent=19 // pred_check_branch
          %194 = sbr.rel (%p192) target = $region28
        $region27: #{tpu_custom_call.1} parent=19 // pred_region
          %s195 = sand.u32 %s75, 1
          %s196 = scalar_lea.sflag [#allocation7], %s195
          %s197 = sand.u32 %s75, 1
          %s198 = smul.addr %s197, 512
          %s199 = scalar_lea.vmem [#allocation6], %s198
          %s200 = smul.u32 16, %s24
          %s201 = smul.u32 4, %s25
          %203 = vsyncadd %s196, 0
          %s204 = smul.addr %s200, 8
          %s205 = sadd.s32 %s201, %s204
          %s206 = smul.addr %s205, 8
          %s207 = scalar_lea.hbm %s1, %s206
          %s208 = sshll.u32 %s207, 4
          %s209 = int_to_ptr.hbm [resolvable:$true] %s208
          %s210 = sshll.u32 %s199, 4
          %s211 = int_to_ptr.vmem [resolvable:$true] %s210
          %216 = dma.hbm_to_vmem [thread:$0]  %s209, 8192, %s211, %s196, 1024, 512, 32
        $region28: #{tpu_custom_call.1} parent=19 // pred_fallthru
          _
      $region20: #{tpu_custom_call.1} parent=5 // pred_fallthru
        _
      %p217 = scmp.le.s32.totalorder 1, %s16
      %p218 = scmp.lt.s32.totalorder %s16, 3
      %p219 = pnand %p217, %p218
      %p220 = pneg %p219
      // Predicated region
      $region29: #{tpu_custom_call.1} parent=5 // pred_check
        _
      $region30: #{tpu_custom_call.1} parent=5 // pred_check_branch
        %222 = sbr.rel (%p219) target = $region32
      $region31: #{tpu_custom_call.1} parent=5 // pred_region
        %s223 = ssub.s32 %s16, 1
        %s224 = sand.u32 %s50, 1
        %s225 = scalar_lea.sflag [#allocation4], %s224
        %s226 = sand.u32 %s50, 1
        %s227 = smul.addr %s226, 32
        %s228 = scalar_lea.vmem [#allocation3], %s227
        // Predicated region
        $region33: #{tpu_custom_call.1} parent=31 // pred_check
          %p229 = pneg %p63
        $region34: #{tpu_custom_call.1} parent=31 // pred_check_branch
          %231 = sbr.rel (%p229) target = $region36
        $region35: #{tpu_custom_call.1} parent=31 // pred_region
          %233 = dma.done %s225, 512
        $region36: #{tpu_custom_call.1} parent=31 // pred_fallthru
          _
        %s234 = sand.u32 %s78, 1
        %s235 = scalar_lea.sflag [#allocation7], %s234
        %s236 = sand.u32 %s78, 1
        %s237 = smul.addr %s236, 512
        %s238 = scalar_lea.vmem [#allocation6], %s237
        // Predicated region
        $region37: #{tpu_custom_call.1} parent=31 // pred_check
          %p239 = pneg %p91
        $region38: #{tpu_custom_call.1} parent=31 // pred_check_branch
          %241 = sbr.rel (%p239) target = $region40
        $region39: #{tpu_custom_call.1} parent=31 // pred_region
          %243 = dma.done %s235, 8192
        $region40: #{tpu_custom_call.1} parent=31 // pred_fallthru
          _
        %s244 = sand.u32 %s50, 1
        %s245 = scalar_lea.sflag [#allocation4], %s244
        %s246 = sand.u32 %s50, 1
        %s247 = smul.addr %s246, 32
        %s248 = scalar_lea.vmem [#allocation3], %s247
        %p249 = pneg %p63
        %p250 = pneg %p60
        %s251 = sand.u32 %s78, 1
        %s252 = scalar_lea.sflag [#allocation7], %s251
        %s253 = sand.u32 %s78, 1
        %s254 = smul.addr %s253, 512
        %s255 = scalar_lea.vmem [#allocation6], %s254
        %p256 = pneg %p91
        %p257 = pneg %p88
        %p258 = scmp.lt.s32.totalorder %s27, 0
        %s259 = scalar_select %p258, %s27, 0
        %s260 = scalar_lea.vmem %s2, %s259
        %p261 = pneg %p117
        %p262 = pneg %p114
        %p263 = pneg %p145
        %p264 = pneg %p142
        %s265 = smul.u32 4, %s28
        %s266 = smul.u32 16, %s27
        %s267 = smul.u32 4, %s28
        %p268 = scmp.lt.s32.totalorder %s27, 0
        %s269 = scalar_select %p268, %s27, 0
        %s270 = scalar_lea.vmem %s2, %s269
        %p271 = scmp.eq.s32.totalorder %s28, 0
        // Predicated region
        $region41: #{tpu_custom_call.1} parent=31 // pred_check
          %p272 = pneg %p271
        $region42: #{tpu_custom_call.1} parent=31 // pred_check_branch
          %274 = sbr.rel (%p272) target = $region44
        $region43: #{tpu_custom_call.1} parent=31 // pred_region
          %275 = vst [vmem:[#allocation2] sm:$0xff] 0.0
        $region44: #{tpu_custom_call.1} parent=31 // pred_fallthru
          _
        %v276 = vld [vmem:[#allocation2] sm:$0xff]
        %v277 = vld [vmem:[%s228] sm:$0xff]
        %v278 = vld [vmem:[%s228 + $0x8] sm:$0xff]
        %v279 = vld [vmem:[%s228 + $0x10] sm:$0xff]
        %v280 = vld [vmem:[%s228 + $0x18] sm:$0xff]
        %v281 = vld [vmem:[%s238] sm:$0xff]
        %v282 = vld [vmem:[%s238 + $0x8] sm:$0xff]
        %v283 = vld [vmem:[%s238 + $0x10] sm:$0xff]
        %v284 = vld [vmem:[%s238 + $0x18] sm:$0xff]
        %v285 = vld [vmem:[%s238 + $0x20] sm:$0xff]
        %v286 = vld [vmem:[%s238 + $0x28] sm:$0xff]
        %v287 = vld [vmem:[%s238 + $0x30] sm:$0xff]
        %v288 = vld [vmem:[%s238 + $0x38] sm:$0xff]
        %v289 = vld [vmem:[%s238 + $0x40] sm:$0xff]
        %v290 = vld [vmem:[%s238 + $0x48] sm:$0xff]
        %v291 = vld [vmem:[%s238 + $0x50] sm:$0xff]
        %v292 = vld [vmem:[%s238 + $0x58] sm:$0xff]
        %v293 = vld [vmem:[%s238 + $0x60] sm:$0xff]
        %v294 = vld [vmem:[%s238 + $0x68] sm:$0xff]
        %v295 = vld [vmem:[%s238 + $0x70] sm:$0xff]
        %v296 = vld [vmem:[%s238 + $0x78] sm:$0xff]
        %v297 = vld [vmem:[%s238 + $0x80] sm:$0xff]
        %v298 = vld [vmem:[%s238 + $0x88] sm:$0xff]
        %v299 = vld [vmem:[%s238 + $0x90] sm:$0xff]
        %v300 = vld [vmem:[%s238 + $0x98] sm:$0xff]
        %v301 = vld [vmem:[%s238 + $0xa0] sm:$0xff]
        %v302 = vld [vmem:[%s238 + $0xa8] sm:$0xff]
        %v303 = vld [vmem:[%s238 + $0xb0] sm:$0xff]
        %v304 = vld [vmem:[%s238 + $0xb8] sm:$0xff]
        %v305 = vld [vmem:[%s238 + $0xc0] sm:$0xff]
        %v306 = vld [vmem:[%s238 + $0xc8] sm:$0xff]
        %v307 = vld [vmem:[%s238 + $0xd0] sm:$0xff]
        %v308 = vld [vmem:[%s238 + $0xd8] sm:$0xff]
        %v309 = vld [vmem:[%s238 + $0xe0] sm:$0xff]
        %v310 = vld [vmem:[%s238 + $0xe8] sm:$0xff]
        %v311 = vld [vmem:[%s238 + $0xf0] sm:$0xff]
        %v312 = vld [vmem:[%s238 + $0xf8] sm:$0xff]
        %v313 = vld [vmem:[%s238 + $0x100] sm:$0xff]
        %v314 = vld [vmem:[%s238 + $0x108] sm:$0xff]
        %v315 = vld [vmem:[%s238 + $0x110] sm:$0xff]
        %v316 = vld [vmem:[%s238 + $0x118] sm:$0xff]
        %v317 = vld [vmem:[%s238 + $0x120] sm:$0xff]
        %v318 = vld [vmem:[%s238 + $0x128] sm:$0xff]
        %v319 = vld [vmem:[%s238 + $0x130] sm:$0xff]
        %v320 = vld [vmem:[%s238 + $0x138] sm:$0xff]
        %v321 = vld [vmem:[%s238 + $0x140] sm:$0xff]
        %v322 = vld [vmem:[%s238 + $0x148] sm:$0xff]
        %v323 = vld [vmem:[%s238 + $0x150] sm:$0xff]
        %v324 = vld [vmem:[%s238 + $0x158] sm:$0xff]
        %v325 = vld [vmem:[%s238 + $0x160] sm:$0xff]
        %v326 = vld [vmem:[%s238 + $0x168] sm:$0xff]
        %v327 = vld [vmem:[%s238 + $0x170] sm:$0xff]
        %v328 = vld [vmem:[%s238 + $0x178] sm:$0xff]
        %v329 = vld [vmem:[%s238 + $0x180] sm:$0xff]
        %v330 = vld [vmem:[%s238 + $0x188] sm:$0xff]
        %v331 = vld [vmem:[%s238 + $0x190] sm:$0xff]
        %v332 = vld [vmem:[%s238 + $0x198] sm:$0xff]
        %v333 = vld [vmem:[%s238 + $0x1a0] sm:$0xff]
        %v334 = vld [vmem:[%s238 + $0x1a8] sm:$0xff]
        %v335 = vld [vmem:[%s238 + $0x1b0] sm:$0xff]
        %v336 = vld [vmem:[%s238 + $0x1b8] sm:$0xff]
        %v337 = vld [vmem:[%s238 + $0x1c0] sm:$0xff]
        %v338 = vld [vmem:[%s238 + $0x1c8] sm:$0xff]
        %v339 = vld [vmem:[%s238 + $0x1d0] sm:$0xff]
        %v340 = vld [vmem:[%s238 + $0x1d8] sm:$0xff]
        %v341 = vld [vmem:[%s238 + $0x1e0] sm:$0xff]
        %v342 = vld [vmem:[%s238 + $0x1e8] sm:$0xff]
        %v343 = vld [vmem:[%s238 + $0x1f0] sm:$0xff]
        %v344 = vld [vmem:[%s238 + $0x1f8] sm:$0xff]
        %345 = vmatpush.xpose.msra.mxu0 %v341
        %346 = vmatpush.xpose.msra.mxu0 %v337
        %347 = vmatpush.xpose.msra.mxu0 %v333
        %348 = vmatpush.xpose.msra.mxu0 %v329
        %349 = vmatpush.xpose.msra.mxu0 %v325
        %350 = vmatpush.xpose.msra.mxu0 %v321
        %351 = vmatpush.xpose.msra.mxu0 %v317
        %352 = vmatpush.xpose.msra.mxu0 %v313
        %353 = vmatpush.xpose.msra.mxu0 %v309
        %354 = vmatpush.xpose.msra.mxu0 %v305
        %355 = vmatpush.xpose.msra.mxu0 %v301
        %356 = vmatpush.xpose.msra.mxu0 %v297
        %357 = vmatpush.xpose.msra.mxu0 %v293
        %358 = vmatpush.xpose.msra.mxu0 %v289
        %359 = vmatpush.xpose.msra.mxu0 %v285
        %360 = vmatpush.xpose.msra.mxu0 %v281
        %361 = vmatmul.f32.gmra.mxu0 %v277
        %v362 = vpop.f32.mrf.mxu0
        %v363 = vadd.f32 0.0, %v362
        %364 = vdwg.mxu0
        %365 = vmatpush.xpose.msra.mxu0 %v342
        %366 = vmatpush.xpose.msra.mxu0 %v338
        %367 = vmatpush.xpose.msra.mxu0 %v334
        %368 = vmatpush.xpose.msra.mxu0 %v330
        %369 = vmatpush.xpose.msra.mxu0 %v326
        %370 = vmatpush.xpose.msra.mxu0 %v322
        %371 = vmatpush.xpose.msra.mxu0 %v318
        %372 = vmatpush.xpose.msra.mxu0 %v314
        %373 = vmatpush.xpose.msra.mxu0 %v310
        %374 = vmatpush.xpose.msra.mxu0 %v306
        %375 = vmatpush.xpose.msra.mxu0 %v302
        %376 = vmatpush.xpose.msra.mxu0 %v298
        %377 = vmatpush.xpose.msra.mxu0 %v294
        %378 = vmatpush.xpose.msra.mxu0 %v290
        %379 = vmatpush.xpose.msra.mxu0 %v286
        %380 = vmatpush.xpose.msra.mxu0 %v282
        %381 = vmatmul.f32.gmra.mxu0 %v278
        %v382 = vpop.f32.mrf.mxu0
        %v383 = vadd.f32 %v363, %v382
        %384 = vdwg.mxu0
        %385 = vmatpush.xpose.msra.mxu0 %v343
        %386 = vmatpush.xpose.msra.mxu0 %v339
        %387 = vmatpush.xpose.msra.mxu0 %v335
        %388 = vmatpush.xpose.msra.mxu0 %v331
        %389 = vmatpush.xpose.msra.mxu0 %v327
        %390 = vmatpush.xpose.msra.mxu0 %v323
        %391 = vmatpush.xpose.msra.mxu0 %v319
        %392 = vmatpush.xpose.msra.mxu0 %v315
        %393 = vmatpush.xpose.msra.mxu0 %v311
        %394 = vmatpush.xpose.msra.mxu0 %v307
        %395 = vmatpush.xpose.msra.mxu0 %v303
        %396 = vmatpush.xpose.msra.mxu0 %v299
        %397 = vmatpush.xpose.msra.mxu0 %v295
        %398 = vmatpush.xpose.msra.mxu0 %v291
        %399 = vmatpush.xpose.msra.mxu0 %v287
        %400 = vmatpush.xpose.msra.mxu0 %v283
        %401 = vmatmul.f32.gmra.mxu0 %v279
        %v402 = vpop.f32.mrf.mxu0
        %v403 = vadd.f32 %v383, %v402
        %404 = vdwg.mxu0
        %405 = vmatpush.xpose.msra.mxu0 %v344
        %406 = vmatpush.xpose.msra.mxu0 %v340
        %407 = vmatpush.xpose.msra.mxu0 %v336
        %408 = vmatpush.xpose.msra.mxu0 %v332
        %409 = vmatpush.xpose.msra.mxu0 %v328
        %410 = vmatpush.xpose.msra.mxu0 %v324
        %411 = vmatpush.xpose.msra.mxu0 %v320
        %412 = vmatpush.xpose.msra.mxu0 %v316
        %413 = vmatpush.xpose.msra.mxu0 %v312
        %414 = vmatpush.xpose.msra.mxu0 %v308
        %415 = vmatpush.xpose.msra.mxu0 %v304
        %416 = vmatpush.xpose.msra.mxu0 %v300
        %417 = vmatpush.xpose.msra.mxu0 %v296
        %418 = vmatpush.xpose.msra.mxu0 %v292
        %419 = vmatpush.xpose.msra.mxu0 %v288
        %420 = vmatpush.xpose.msra.mxu0 %v284
        %421 = vmatmul.f32.gmra.mxu0 %v280
        %v422 = vpop.f32.mrf.mxu0
        %v423 = vadd.f32 %v403, %v422
        %424 = vdwg.mxu0
        %v425 = vadd.f32 %v276, %v423
        %426 = vst [vmem:[#allocation2] sm:$0xff] %v425
        %p427 = scmp.eq.s32.totalorder %s28, 1
        // Predicated region
        $region45: #{tpu_custom_call.1} parent=31 // pred_check
          %p428 = pneg %p427
        $region46: #{tpu_custom_call.1} parent=31 // pred_check_branch
          %430 = sbr.rel (%p428) target = $region48
        $region47: #{tpu_custom_call.1} parent=31 // pred_region
          %v431 = vld [vmem:[#allocation2] sm:$0xff]
          %v432 = vld [vmem:[%s270] sm:$0x1]
          %v434 = vperm.slane %v432, 0
          %v436 = vadd.f32 %v431, %v434
          %437 = vst [vmem:[#allocation8] sm:$0xff] %v436
        $region48: #{tpu_custom_call.1} parent=31 // pred_fallthru
          _
        // Predicated region
        $region49: #{tpu_custom_call.1} parent=31 // pred_check
          %p438 = pneg %p142
        $region50: #{tpu_custom_call.1} parent=31 // pred_check_branch
          %440 = sbr.rel (%p438) target = $region52
        $region51: #{tpu_custom_call.1} parent=31 // pred_region
          %442 = vsyncadd [#allocation5], 0
          %s443 = sadd.s32 %s27, %s26
          %s444 = smul.addr %s443, 8
          %s445 = scalar_lea.hbm %s3, %s444
          %s447 = sshll.u32 [#allocation8], 4
          %s448 = int_to_ptr.vmem [resolvable:$true] %s447
          %s449 = sshll.u32 %s445, 4
          %s450 = int_to_ptr.hbm [resolvable:$true] %s449
          %452 = dma.vmem_to_hbm [thread:$0]  %s448, 128, %s450, [#allocation5]
        $region52: #{tpu_custom_call.1} parent=31 // pred_fallthru
          _
        // Predicated region
        $region53: #{tpu_custom_call.1} parent=31 // pred_check
          %p453 = pneg %p142
        $region54: #{tpu_custom_call.1} parent=31 // pred_check_branch
          %455 = sbr.rel (%p453) target = $region56
        $region55: #{tpu_custom_call.1} parent=31 // pred_region
          %457 = dma.done [#allocation5], 128
        $region56: #{tpu_custom_call.1} parent=31 // pred_fallthru
          _
      $region32: #{tpu_custom_call.1} parent=5 // pred_fallthru
        _
      %p458 = scmp.le.s32.totalorder 2, %s16
      // Predicated region
      $region57: #{tpu_custom_call.1} parent=5 // pred_check
        %p459 = pneg %p458
      $region58: #{tpu_custom_call.1} parent=5 // pred_check_branch
        %461 = sbr.rel (%p459) target = $region60
      $region59: #{tpu_custom_call.1} parent=5 // pred_region
        %s462 = ssub.s32 %s16, 2
      $region60: #{tpu_custom_call.1} parent=5 // pred_fallthru
        _
    $region6: #{tpu_custom_call.1} parent=1 // loop_footer
      %s20 = sadd.s32 1, %s16
    $region7: #{tpu_custom_call.1} parent=1 // loop_footer_branch
      %15 = sbr.rel target = $region3
    $region8: #{tpu_custom_call.1} parent=1 // loop_exit
      _
    %463 = vsyncpa [#allocation4], 1
    %s464 = scalar_lea.sflag [#allocation4], 1
    %465 = vsyncpa %s464, 1
    %466 = vsyncpa [#allocation7], 1
    %s467 = scalar_lea.sflag [#allocation7], 1
    %468 = vsyncpa %s467, 1
    %469 = vsyncpa [#allocation5], 1
    %s470 = scalar_lea.sflag [#allocation5], 1
    %471 = vsyncpa %s470, 1

</llo_original>
